<compile_context>
chip_gen: v7x
topology: tpu7x:2x2x1
jax: 0.10.0
libtpu: 0.0.40
codegen_flags: <defaults>
</compile_context>

<pallas_src>
import functools

import jax
import jax.numpy as jnp
from jax.experimental import pallas as pl
from jax.experimental.pallas import tpu as pltpu


def _imdb_lstm_kernel(x_ref, w_ref, u_ref, b_ref, wp_ref, bp_ref, out_ref,
                      gx_ref, *, batch, seq_len):
    B = batch
    T = seq_len
    H = u_ref.shape[0]
    H4 = u_ref.shape[1]

    # --- Hoisted input projection: one MXU pass pushes W exactly once. ---
    # x_ref rows are ordered b*T + t (plain row-major flatten of (B, T, D)).
    # Result goes to a VMEM scratch so the recurrence can read per-timestep
    # rows with a cheap static strided ref load (off the serial h-chain).
    gx_ref[...] = (jnp.dot(x_ref[...], w_ref[...],
                           preferred_element_type=jnp.float32)
                   + b_ref[...])                                # (B*T, 4H) f32

    # --- Single-EUP-op gate nonlinearity constants (hoisted vregs). ---
    # sigmoid(x) = 0.5*tanh(0.5*x) + 0.5 ;  tanh(x) = 1*tanh(1*x) + 0.
    lane = jax.lax.broadcasted_iota(jnp.int32, (B, H4), 1)
    is_g = jnp.logical_and(lane >= 2 * H, lane < 3 * H)
    sc = jnp.where(is_g, jnp.float32(1.0), jnp.float32(0.5))
    off = jnp.where(is_g, jnp.float32(0.0), jnp.float32(0.5))

    h = jnp.zeros((B, H), jnp.float32)
    c = jnp.zeros((B, H), jnp.float32)
    h_sum = jnp.zeros((B, H), jnp.float32)

    # Fully-unrolled recurrence (T is small & static) -> vreg-resident state,
    # full scheduler visibility across timesteps.
    # TODO(synk): verify in the bundle dump that the U weight push is hoisted
    # out of the unrolled jnp.dot's; if not, drive the MXU explicitly with
    # pltpu.matmul_push_rhs / matmul_acc_lhs / matmul_pop to keep U resident.
    for t in range(T):
        gx_t = gx_ref[pl.ds(t, B, stride=T), :]                 # rows b*T + t
        gates = gx_t + jnp.dot(h.astype(u_ref.dtype), u_ref[...],
                               preferred_element_type=jnp.float32)
        act = sc * jnp.tanh(sc * gates) + off                   # one EUP op
        # TODO(synk): if the bundle shows relayout chains for these 32-lane
        # sub-slices, replace with pltpu.roll-based alignment (XLU slot idle).
        i_t = act[:, 0 * H:1 * H]
        f_t = act[:, 1 * H:2 * H]
        g_t = act[:, 2 * H:3 * H]
        o_t = act[:, 3 * H:4 * H]
        c = f_t * c + i_t * g_t
        h = o_t * jnp.tanh(c)
        h_sum = h_sum + h

    # Mean over the sequence dimension, then the final linear projection.
    mean_h = h_sum * (1.0 / T)
    out_ref[...] = (jnp.dot(mean_h.astype(wp_ref.dtype), wp_ref[...],
                            preferred_element_type=jnp.float32)
                    + bp_ref[...]).astype(out_ref.dtype)


def imdb_lstm_forward(x, W, U, bias, Wp, bp, *, matmul_dtype=jnp.float32):
    """x: (B, T, D) float32. Returns (B, P) float32.

    matmul_dtype=jnp.bfloat16 keeps MXU operands in bf16 (v6e/v7x win) while
    all elementwise gate/state math stays f32.
    """
    B, T, D = x.shape
    H4 = W.shape[1]
    H = H4 // 4
    P = Wp.shape[1]

    # Row-major flatten only (metadata-only in XLA; the previous version paid
    # a full HBM read+write for a time-major transpose here).
    x2 = x.reshape(B * T, D).astype(matmul_dtype)
    W2 = W.astype(matmul_dtype)
    U2 = U.astype(matmul_dtype)
    Wp2 = Wp.astype(matmul_dtype)
    bias2 = bias.reshape(1, H4).astype(jnp.float32)
    bp2 = bp.reshape(1, P).astype(jnp.float32)

    grid_spec = pltpu.PrefetchScalarGridSpec(
        num_scalar_prefetch=0,
        grid=(1,),                                   # whole forward in one step
        in_specs=[
            pl.BlockSpec((B * T, D), lambda i: (0, 0)),   # x (row-major flat)
            pl.BlockSpec((D, H4), lambda i: (0, 0)),      # W
            pl.BlockSpec((H, H4), lambda i: (0, 0)),      # U
            pl.BlockSpec((1, H4), lambda i: (0, 0)),      # bias
            pl.BlockSpec((H, P), lambda i: (0, 0)),       # proj weight
            pl.BlockSpec((1, P), lambda i: (0, 0)),       # proj bias
        ],
        out_specs=pl.BlockSpec((B, P), lambda i: (0, 0)),
        scratch_shapes=[pltpu.VMEM((B * T, H4), jnp.float32)],  # gates_x
    )

    kernel = functools.partial(_imdb_lstm_kernel, batch=B, seq_len=T)

    # TODO(synk): once batch is large, add a leading "parallel" batch grid axis
    # (batch tile multiple of 8 f32 / 16 bf16) so v7x's second TensorCore works.
    return pl.pallas_call(
        kernel,
        out_shape=jax.ShapeDtypeStruct((B, P), jnp.float32),
        grid_spec=grid_spec,
        compiler_params=pltpu.CompilerParams(
            dimension_semantics=("arbitrary",),
            vmem_limit_bytes=32 * 1024 * 1024),
    )(x2, W2, U2, bias2, Wp2, bp2)


def _reference_forward(x, W, U, bias, Wp, bp):
    """Pure-JAX reference matching the PyTorch semantics (dropout=0)."""
    B, T, D = x.shape
    H = U.shape[0]
    h = jnp.zeros((B, H), jnp.float32)
    c = jnp.zeros((B, H), jnp.float32)
    hs = []
    for t in range(T):
        gates = x[:, t, :] @ W + h @ U + bias
        i = jax.nn.sigmoid(gates[:, :H])
        f = jax.nn.sigmoid(gates[:, H:2 * H])
        g = jnp.tanh(gates[:, 2 * H:3 * H])
        o = jax.nn.sigmoid(gates[:, 3 * H:])
        c = f * c + i * g
        h = o * jnp.tanh(c)
        hs.append(h)
    seq = jnp.stack(hs, axis=1)          # (B, T, H)
    mean_h = jnp.mean(seq, axis=1)
    return mean_h @ Wp + bp


if __name__ == "__main__":
    # Small, TPU-friendly shapes consistent with the module's forward:
    # batch=2, seq=8, input_size=32, hidden_size=32 (4H=128), proj_size=2.
    B, T, D, H, P = 2, 8, 32, 32, 2

    key = jax.random.PRNGKey(0)
    k_x, k_W, k_U, k_b, k_Wp, k_bp = jax.random.split(key, 6)

    stdv = 1.0 / (H ** 0.5)
    x = jax.random.normal(k_x, (B, T, D), dtype=jnp.float32)
    W = jax.random.uniform(k_W, (D, 4 * H), jnp.float32, -stdv, stdv)
    U = jax.random.uniform(k_U, (H, 4 * H), jnp.float32, -stdv, stdv)
    bias = jax.random.uniform(k_b, (4 * H,), jnp.float32, -stdv, stdv)
    Wp = jax.random.uniform(k_Wp, (H, P), jnp.float32, -stdv, stdv)
    bp = jax.random.uniform(k_bp, (P,), jnp.float32, -stdv, stdv)

    ref = _reference_forward(x, W, U, bias, Wp, bp)

    # f32 matmuls: tight check against the f32 reference.
    out = imdb_lstm_forward(x, W, U, bias, Wp, bp)
    out = jax.block_until_ready(out)
    assert out.shape == (B, P)
    assert jnp.allclose(out, ref, atol=1e-4, rtol=1e-4), (out, ref)

    # bf16 MXU operands (v6e/v7x recommendation): looser tolerance.
    out_bf16 = imdb_lstm_forward(x, W, U, bias, Wp, bp,
                                 matmul_dtype=jnp.bfloat16)
    out_bf16 = jax.block_until_ready(out_bf16)
    assert jnp.allclose(out_bf16, ref, atol=5e-2, rtol=5e-2), (out_bf16, ref)

    # TODO(synk): dropout is a no-op at the default rate 0.0; non-zero dropout
    # would need pltpu.prng_seed / pltpu.prng_random_bits inside the kernel.
    print("KERNEL_OK")
</pallas_src>

<mosaic_0001>
module attributes {stable_mosaic.version = 11 : i64} {
  func.func @_imdb_lstm_kernel(%arg0: i32, %arg1: memref<16x32xf32, #tpu.memory_space<vmem>>, %arg2: memref<32x128xf32, #tpu.memory_space<vmem>>, %arg3: memref<32x128xf32, #tpu.memory_space<vmem>>, %arg4: memref<1x128xf32, #tpu.memory_space<vmem>>, %arg5: memref<32x2xf32, #tpu.memory_space<vmem>>, %arg6: memref<1x2xf32, #tpu.memory_space<vmem>>, %arg7: memref<2x2xf32, #tpu.memory_space<vmem>>, %arg8: memref<16x128xf32, #tpu.memory_space<vmem>>) attributes {dimension_semantics = [#tpu.dimension_semantics<arbitrary>], iteration_bounds = array<i64: 1>, scalar_prefetch = 0 : i64, scratch_operands = 1 : i64, tpu.core_type = #tpu.core_type<tc>, window_params = [{pipeline_mode = #tpu.pipeline_mode<synchronous>, transform_indices = @transform_0, window_bounds = array<i64: 16, 32>}, {pipeline_mode = #tpu.pipeline_mode<synchronous>, transform_indices = @transform_1, window_bounds = array<i64: 32, 128>}, {pipeline_mode = #tpu.pipeline_mode<synchronous>, transform_indices = @transform_2, window_bounds = array<i64: 32, 128>}, {pipeline_mode = #tpu.pipeline_mode<synchronous>, transform_indices = @transform_3, window_bounds = array<i64: 1, 128>}, {pipeline_mode = #tpu.pipeline_mode<synchronous>, transform_indices = @transform_4, window_bounds = array<i64: 32, 2>}, {pipeline_mode = #tpu.pipeline_mode<synchronous>, transform_indices = @transform_5, window_bounds = array<i64: 1, 2>}, {pipeline_mode = #tpu.pipeline_mode<synchronous>, transform_indices = @transform_6, window_bounds = array<i64: 2, 2>}]} {
    %c0 = arith.constant 0 : index
    %c0_0 = arith.constant 0 : index
    %0 = vector.load %arg1[%c0, %c0_0] : memref<16x32xf32, #tpu.memory_space<vmem>>, vector<16x32xf32>
    %c0_1 = arith.constant 0 : index
    %c0_2 = arith.constant 0 : index
    %1 = vector.load %arg2[%c0_1, %c0_2] : memref<32x128xf32, #tpu.memory_space<vmem>>, vector<32x128xf32>
    %cst = arith.constant dense<0.000000e+00> : vector<16x128xf32>
    %2 = tpu.matmul %0, %1, %cst {dimension_numbers = #tpu.dot_dimension_numbers<[1], [0], [0], [1], [0, 0, 1, 1], [], []>} : vector<16x32xf32>, vector<32x128xf32>, vector<16x128xf32> -> vector<16x128xf32>
    %c0_3 = arith.constant 0 : index
    %c0_4 = arith.constant 0 : index
    %3 = vector.load %arg4[%c0_3, %c0_4] : memref<1x128xf32, #tpu.memory_space<vmem>>, vector<1x128xf32>
    %4 = vector.broadcast %3 : vector<1x128xf32> to vector<16x128xf32>
    %5 = arith.addf %2, %4 : vector<16x128xf32>
    %c0_5 = arith.constant 0 : index
    %c0_6 = arith.constant 0 : index
    %6 = vector.load %arg8[%c0_5, %c0_6] : memref<16x128xf32, #tpu.memory_space<vmem>>, vector<16x128xf32>
    tpu.vector_store %arg8[%c0_5, %c0_6], %5 {strides = array<i32>} : memref<16x128xf32, #tpu.memory_space<vmem>>, vector<16x128xf32>,
    %7 = tpu.iota {dimensions = array<i32: 1>} : vector<2x128xi32>
    %c64_i32 = arith.constant 64 : i32
    %8 = vector.broadcast %c64_i32 : i32 to vector<2x128xi32>
    %9 = arith.cmpi sge, %7, %8 : vector<2x128xi32>
    %c96_i32 = arith.constant 96 : i32
    %10 = vector.broadcast %c96_i32 : i32 to vector<2x128xi32>
    %11 = arith.cmpi slt, %7, %10 : vector<2x128xi32>
    %12 = arith.andi %9, %11 : vector<2x128xi1>
    %cst_7 = arith.constant 1.000000e+00 : f32
    %cst_8 = arith.constant 5.000000e-01 : f32
    %13 = vector.broadcast %cst_7 : f32 to vector<2x128xf32>
    %14 = vector.broadcast %cst_8 : f32 to vector<2x128xf32>
    %15 = arith.select %12, %13, %14 : vector<2x128xi1>, vector<2x128xf32>
    %cst_9 = arith.constant 0.000000e+00 : f32
    %cst_10 = arith.constant 5.000000e-01 : f32
    %16 = vector.broadcast %cst_9 : f32 to vector<2x128xf32>
    %17 = vector.broadcast %cst_10 : f32 to vector<2x128xf32>
    %18 = arith.select %12, %16, %17 : vector<2x128xi1>, vector<2x128xf32>
    %cst_11 = arith.constant 0.000000e+00 : f32
    %19 = vector.broadcast %cst_11 : f32 to vector<2x32xf32>
    %cst_12 = arith.constant 0.000000e+00 : f32
    %20 = vector.broadcast %cst_12 : f32 to vector<2x32xf32>
    %cst_13 = arith.constant 0.000000e+00 : f32
    %21 = vector.broadcast %cst_13 : f32 to vector<2x32xf32>
    %c0_14 = arith.constant 0 : index
    %c0_15 = arith.constant 0 : index
    %22 = tpu.strided_load %arg8[%c0_14, %c0_15] {strides = array<i32: 8, 1>} : memref<16x128xf32, #tpu.memory_space<vmem>>, vector<2x128xf32>
    %c0_16 = arith.constant 0 : index
    %c0_17 = arith.constant 0 : index
    %23 = vector.load %arg3[%c0_16, %c0_17] : memref<32x128xf32, #tpu.memory_space<vmem>>, vector<32x128xf32>
    %cst_18 = arith.constant dense<0.000000e+00> : vector<2x128xf32>
    %24 = tpu.matmul %19, %23, %cst_18 {dimension_numbers = #tpu.dot_dimension_numbers<[1], [0], [0], [1], [0, 0, 1, 1], [], []>} : vector<2x32xf32>, vector<32x128xf32>, vector<2x128xf32> -> vector<2x128xf32>
    %25 = arith.addf %22, %24 : vector<2x128xf32>
    %26 = arith.mulf %15, %25 : vector<2x128xf32>
    %27 = math.tanh %26 : vector<2x128xf32>
    %28 = arith.mulf %15, %27 : vector<2x128xf32>
    %29 = arith.addf %28, %18 : vector<2x128xf32>
    %30 = vector.extract_strided_slice %29 {offsets = [0, 0], sizes = [2, 32], strides = [1, 1]} : vector<2x128xf32> to vector<2x32xf32>
    %31 = vector.extract_strided_slice %29 {offsets = [0, 32], sizes = [2, 32], strides = [1, 1]} : vector<2x128xf32> to vector<2x32xf32>
    %32 = vector.extract_strided_slice %29 {offsets = [0, 64], sizes = [2, 32], strides = [1, 1]} : vector<2x128xf32> to vector<2x32xf32>
    %33 = vector.extract_strided_slice %29 {offsets = [0, 96], sizes = [2, 32], strides = [1, 1]} : vector<2x128xf32> to vector<2x32xf32>
    %34 = arith.mulf %31, %20 : vector<2x32xf32>
    %35 = arith.mulf %30, %32 : vector<2x32xf32>
    %36 = arith.addf %34, %35 : vector<2x32xf32>
    %37 = math.tanh %36 : vector<2x32xf32>
    %38 = arith.mulf %33, %37 : vector<2x32xf32>
    %39 = arith.addf %21, %38 : vector<2x32xf32>
    %c1 = arith.constant 1 : index
    %c0_19 = arith.constant 0 : index
    %40 = tpu.strided_load %arg8[%c1, %c0_19] {strides = array<i32: 8, 1>} : memref<16x128xf32, #tpu.memory_space<vmem>>, vector<2x128xf32>
    %c0_20 = arith.constant 0 : index
    %c0_21 = arith.constant 0 : index
    %41 = vector.load %arg3[%c0_20, %c0_21] : memref<32x128xf32, #tpu.memory_space<vmem>>, vector<32x128xf32>
    %cst_22 = arith.constant dense<0.000000e+00> : vector<2x128xf32>
    %42 = tpu.matmul %38, %41, %cst_22 {dimension_numbers = #tpu.dot_dimension_numbers<[1], [0], [0], [1], [0, 0, 1, 1], [], []>} : vector<2x32xf32>, vector<32x128xf32>, vector<2x128xf32> -> vector<2x128xf32>
    %43 = arith.addf %40, %42 : vector<2x128xf32>
    %44 = arith.mulf %15, %43 : vector<2x128xf32>
    %45 = math.tanh %44 : vector<2x128xf32>
    %46 = arith.mulf %15, %45 : vector<2x128xf32>
    %47 = arith.addf %46, %18 : vector<2x128xf32>
    %48 = vector.extract_strided_slice %47 {offsets = [0, 0], sizes = [2, 32], strides = [1, 1]} : vector<2x128xf32> to vector<2x32xf32>
    %49 = vector.extract_strided_slice %47 {offsets = [0, 32], sizes = [2, 32], strides = [1, 1]} : vector<2x128xf32> to vector<2x32xf32>
    %50 = vector.extract_strided_slice %47 {offsets = [0, 64], sizes = [2, 32], strides = [1, 1]} : vector<2x128xf32> to vector<2x32xf32>
    %51 = vector.extract_strided_slice %47 {offsets = [0, 96], sizes = [2, 32], strides = [1, 1]} : vector<2x128xf32> to vector<2x32xf32>
    %52 = arith.mulf %49, %36 : vector<2x32xf32>
    %53 = arith.mulf %48, %50 : vector<2x32xf32>
    %54 = arith.addf %52, %53 : vector<2x32xf32>
    %55 = math.tanh %54 : vector<2x32xf32>
    %56 = arith.mulf %51, %55 : vector<2x32xf32>
    %57 = arith.addf %39, %56 : vector<2x32xf32>
    %c2 = arith.constant 2 : index
    %c0_23 = arith.constant 0 : index
    %58 = tpu.strided_load %arg8[%c2, %c0_23] {strides = array<i32: 8, 1>} : memref<16x128xf32, #tpu.memory_space<vmem>>, vector<2x128xf32>
    %c0_24 = arith.constant 0 : index
    %c0_25 = arith.constant 0 : index
    %59 = vector.load %arg3[%c0_24, %c0_25] : memref<32x128xf32, #tpu.memory_space<vmem>>, vector<32x128xf32>
    %cst_26 = arith.constant dense<0.000000e+00> : vector<2x128xf32>
    %60 = tpu.matmul %56, %59, %cst_26 {dimension_numbers = #tpu.dot_dimension_numbers<[1], [0], [0], [1], [0, 0, 1, 1], [], []>} : vector<2x32xf32>, vector<32x128xf32>, vector<2x128xf32> -> vector<2x128xf32>
    %61 = arith.addf %58, %60 : vector<2x128xf32>
    %62 = arith.mulf %15, %61 : vector<2x128xf32>
    %63 = math.tanh %62 : vector<2x128xf32>
    %64 = arith.mulf %15, %63 : vector<2x128xf32>
    %65 = arith.addf %64, %18 : vector<2x128xf32>
    %66 = vector.extract_strided_slice %65 {offsets = [0, 0], sizes = [2, 32], strides = [1, 1]} : vector<2x128xf32> to vector<2x32xf32>
    %67 = vector.extract_strided_slice %65 {offsets = [0, 32], sizes = [2, 32], strides = [1, 1]} : vector<2x128xf32> to vector<2x32xf32>
    %68 = vector.extract_strided_slice %65 {offsets = [0, 64], sizes = [2, 32], strides = [1, 1]} : vector<2x128xf32> to vector<2x32xf32>
    %69 = vector.extract_strided_slice %65 {offsets = [0, 96], sizes = [2, 32], strides = [1, 1]} : vector<2x128xf32> to vector<2x32xf32>
    %70 = arith.mulf %67, %54 : vector<2x32xf32>
    %71 = arith.mulf %66, %68 : vector<2x32xf32>
    %72 = arith.addf %70, %71 : vector<2x32xf32>
    %73 = math.tanh %72 : vector<2x32xf32>
    %74 = arith.mulf %69, %73 : vector<2x32xf32>
    %75 = arith.addf %57, %74 : vector<2x32xf32>
    %c3 = arith.constant 3 : index
    %c0_27 = arith.constant 0 : index
    %76 = tpu.strided_load %arg8[%c3, %c0_27] {strides = array<i32: 8, 1>} : memref<16x128xf32, #tpu.memory_space<vmem>>, vector<2x128xf32>
    %c0_28 = arith.constant 0 : index
    %c0_29 = arith.constant 0 : index
    %77 = vector.load %arg3[%c0_28, %c0_29] : memref<32x128xf32, #tpu.memory_space<vmem>>, vector<32x128xf32>
    %cst_30 = arith.constant dense<0.000000e+00> : vector<2x128xf32>
    %78 = tpu.matmul %74, %77, %cst_30 {dimension_numbers = #tpu.dot_dimension_numbers<[1], [0], [0], [1], [0, 0, 1, 1], [], []>} : vector<2x32xf32>, vector<32x128xf32>, vector<2x128xf32> -> vector<2x128xf32>
    %79 = arith.addf %76, %78 : vector<2x128xf32>
    %80 = arith.mulf %15, %79 : vector<2x128xf32>
    %81 = math.tanh %80 : vector<2x128xf32>
    %82 = arith.mulf %15, %81 : vector<2x128xf32>
    %83 = arith.addf %82, %18 : vector<2x128xf32>
    %84 = vector.extract_strided_slice %83 {offsets = [0, 0], sizes = [2, 32], strides = [1, 1]} : vector<2x128xf32> to vector<2x32xf32>
    %85 = vector.extract_strided_slice %83 {offsets = [0, 32], sizes = [2, 32], strides = [1, 1]} : vector<2x128xf32> to vector<2x32xf32>
    %86 = vector.extract_strided_slice %83 {offsets = [0, 64], sizes = [2, 32], strides = [1, 1]} : vector<2x128xf32> to vector<2x32xf32>
    %87 = vector.extract_strided_slice %83 {offsets = [0, 96], sizes = [2, 32], strides = [1, 1]} : vector<2x128xf32> to vector<2x32xf32>
    %88 = arith.mulf %85, %72 : vector<2x32xf32>
    %89 = arith.mulf %84, %86 : vector<2x32xf32>
    %90 = arith.addf %88, %89 : vector<2x32xf32>
    %91 = math.tanh %90 : vector<2x32xf32>
    %92 = arith.mulf %87, %91 : vector<2x32xf32>
    %93 = arith.addf %75, %92 : vector<2x32xf32>
    %c4 = arith.constant 4 : index
    %c0_31 = arith.constant 0 : index
    %94 = tpu.strided_load %arg8[%c4, %c0_31] {strides = array<i32: 8, 1>} : memref<16x128xf32, #tpu.memory_space<vmem>>, vector<2x128xf32>
    %c0_32 = arith.constant 0 : index
    %c0_33 = arith.constant 0 : index
    %95 = vector.load %arg3[%c0_32, %c0_33] : memref<32x128xf32, #tpu.memory_space<vmem>>, vector<32x128xf32>
    %cst_34 = arith.constant dense<0.000000e+00> : vector<2x128xf32>
    %96 = tpu.matmul %92, %95, %cst_34 {dimension_numbers = #tpu.dot_dimension_numbers<[1], [0], [0], [1], [0, 0, 1, 1], [], []>} : vector<2x32xf32>, vector<32x128xf32>, vector<2x128xf32> -> vector<2x128xf32>
    %97 = arith.addf %94, %96 : vector<2x128xf32>
    %98 = arith.mulf %15, %97 : vector<2x128xf32>
    %99 = math.tanh %98 : vector<2x128xf32>
    %100 = arith.mulf %15, %99 : vector<2x128xf32>
    %101 = arith.addf %100, %18 : vector<2x128xf32>
    %102 = vector.extract_strided_slice %101 {offsets = [0, 0], sizes = [2, 32], strides = [1, 1]} : vector<2x128xf32> to vector<2x32xf32>
    %103 = vector.extract_strided_slice %101 {offsets = [0, 32], sizes = [2, 32], strides = [1, 1]} : vector<2x128xf32> to vector<2x32xf32>
    %104 = vector.extract_strided_slice %101 {offsets = [0, 64], sizes = [2, 32], strides = [1, 1]} : vector<2x128xf32> to vector<2x32xf32>
    %105 = vector.extract_strided_slice %101 {offsets = [0, 96], sizes = [2, 32], strides = [1, 1]} : vector<2x128xf32> to vector<2x32xf32>
    %106 = arith.mulf %103, %90 : vector<2x32xf32>
    %107 = arith.mulf %102, %104 : vector<2x32xf32>
    %108 = arith.addf %106, %107 : vector<2x32xf32>
    %109 = math.tanh %108 : vector<2x32xf32>
    %110 = arith.mulf %105, %109 : vector<2x32xf32>
    %111 = arith.addf %93, %110 : vector<2x32xf32>
    %c5 = arith.constant 5 : index
    %c0_35 = arith.constant 0 : index
    %112 = tpu.strided_load %arg8[%c5, %c0_35] {strides = array<i32: 8, 1>} : memref<16x128xf32, #tpu.memory_space<vmem>>, vector<2x128xf32>
    %c0_36 = arith.constant 0 : index
    %c0_37 = arith.constant 0 : index
    %113 = vector.load %arg3[%c0_36, %c0_37] : memref<32x128xf32, #tpu.memory_space<vmem>>, vector<32x128xf32>
    %cst_38 = arith.constant dense<0.000000e+00> : vector<2x128xf32>
    %114 = tpu.matmul %110, %113, %cst_38 {dimension_numbers = #tpu.dot_dimension_numbers<[1], [0], [0], [1], [0, 0, 1, 1], [], []>} : vector<2x32xf32>, vector<32x128xf32>, vector<2x128xf32> -> vector<2x128xf32>
    %115 = arith.addf %112, %114 : vector<2x128xf32>
    %116 = arith.mulf %15, %115 : vector<2x128xf32>
    %117 = math.tanh %116 : vector<2x128xf32>
    %118 = arith.mulf %15, %117 : vector<2x128xf32>
    %119 = arith.addf %118, %18 : vector<2x128xf32>
    %120 = vector.extract_strided_slice %119 {offsets = [0, 0], sizes = [2, 32], strides = [1, 1]} : vector<2x128xf32> to vector<2x32xf32>
    %121 = vector.extract_strided_slice %119 {offsets = [0, 32], sizes = [2, 32], strides = [1, 1]} : vector<2x128xf32> to vector<2x32xf32>
    %122 = vector.extract_strided_slice %119 {offsets = [0, 64], sizes = [2, 32], strides = [1, 1]} : vector<2x128xf32> to vector<2x32xf32>
    %123 = vector.extract_strided_slice %119 {offsets = [0, 96], sizes = [2, 32], strides = [1, 1]} : vector<2x128xf32> to vector<2x32xf32>
    %124 = arith.mulf %121, %108 : vector<2x32xf32>
    %125 = arith.mulf %120, %122 : vector<2x32xf32>
    %126 = arith.addf %124, %125 : vector<2x32xf32>
    %127 = math.tanh %126 : vector<2x32xf32>
    %128 = arith.mulf %123, %127 : vector<2x32xf32>
    %129 = arith.addf %111, %128 : vector<2x32xf32>
    %c6 = arith.constant 6 : index
    %c0_39 = arith.constant 0 : index
    %130 = tpu.strided_load %arg8[%c6, %c0_39] {strides = array<i32: 8, 1>} : memref<16x128xf32, #tpu.memory_space<vmem>>, vector<2x128xf32>
    %c0_40 = arith.constant 0 : index
    %c0_41 = arith.constant 0 : index
    %131 = vector.load %arg3[%c0_40, %c0_41] : memref<32x128xf32, #tpu.memory_space<vmem>>, vector<32x128xf32>
    %cst_42 = arith.constant dense<0.000000e+00> : vector<2x128xf32>
    %132 = tpu.matmul %128, %131, %cst_42 {dimension_numbers = #tpu.dot_dimension_numbers<[1], [0], [0], [1], [0, 0, 1, 1], [], []>} : vector<2x32xf32>, vector<32x128xf32>, vector<2x128xf32> -> vector<2x128xf32>
    %133 = arith.addf %130, %132 : vector<2x128xf32>
    %134 = arith.mulf %15, %133 : vector<2x128xf32>
    %135 = math.tanh %134 : vector<2x128xf32>
    %136 = arith.mulf %15, %135 : vector<2x128xf32>
    %137 = arith.addf %136, %18 : vector<2x128xf32>
    %138 = vector.extract_strided_slice %137 {offsets = [0, 0], sizes = [2, 32], strides = [1, 1]} : vector<2x128xf32> to vector<2x32xf32>
    %139 = vector.extract_strided_slice %137 {offsets = [0, 32], sizes = [2, 32], strides = [1, 1]} : vector<2x128xf32> to vector<2x32xf32>
    %140 = vector.extract_strided_slice %137 {offsets = [0, 64], sizes = [2, 32], strides = [1, 1]} : vector<2x128xf32> to vector<2x32xf32>
    %141 = vector.extract_strided_slice %137 {offsets = [0, 96], sizes = [2, 32], strides = [1, 1]} : vector<2x128xf32> to vector<2x32xf32>
    %142 = arith.mulf %139, %126 : vector<2x32xf32>
    %143 = arith.mulf %138, %140 : vector<2x32xf32>
    %144 = arith.addf %142, %143 : vector<2x32xf32>
    %145 = math.tanh %144 : vector<2x32xf32>
    %146 = arith.mulf %141, %145 : vector<2x32xf32>
    %147 = arith.addf %129, %146 : vector<2x32xf32>
    %c7 = arith.constant 7 : index
    %c0_43 = arith.constant 0 : index
    %148 = tpu.strided_load %arg8[%c7, %c0_43] {strides = array<i32: 8, 1>} : memref<16x128xf32, #tpu.memory_space<vmem>>, vector<2x128xf32>
    %c0_44 = arith.constant 0 : index
    %c0_45 = arith.constant 0 : index
    %149 = vector.load %arg3[%c0_44, %c0_45] : memref<32x128xf32, #tpu.memory_space<vmem>>, vector<32x128xf32>
    %cst_46 = arith.constant dense<0.000000e+00> : vector<2x128xf32>
    %150 = tpu.matmul %146, %149, %cst_46 {dimension_numbers = #tpu.dot_dimension_numbers<[1], [0], [0], [1], [0, 0, 1, 1], [], []>} : vector<2x32xf32>, vector<32x128xf32>, vector<2x128xf32> -> vector<2x128xf32>
    %151 = arith.addf %148, %150 : vector<2x128xf32>
    %152 = arith.mulf %15, %151 : vector<2x128xf32>
    %153 = math.tanh %152 : vector<2x128xf32>
    %154 = arith.mulf %15, %153 : vector<2x128xf32>
    %155 = arith.addf %154, %18 : vector<2x128xf32>
    %156 = vector.extract_strided_slice %155 {offsets = [0, 0], sizes = [2, 32], strides = [1, 1]} : vector<2x128xf32> to vector<2x32xf32>
    %157 = vector.extract_strided_slice %155 {offsets = [0, 32], sizes = [2, 32], strides = [1, 1]} : vector<2x128xf32> to vector<2x32xf32>
    %158 = vector.extract_strided_slice %155 {offsets = [0, 64], sizes = [2, 32], strides = [1, 1]} : vector<2x128xf32> to vector<2x32xf32>
    %159 = vector.extract_strided_slice %155 {offsets = [0, 96], sizes = [2, 32], strides = [1, 1]} : vector<2x128xf32> to vector<2x32xf32>
    %160 = arith.mulf %157, %144 : vector<2x32xf32>
    %161 = arith.mulf %156, %158 : vector<2x32xf32>
    %162 = arith.addf %160, %161 : vector<2x32xf32>
    %163 = math.tanh %162 : vector<2x32xf32>
    %164 = arith.mulf %159, %163 : vector<2x32xf32>
    %165 = arith.addf %147, %164 : vector<2x32xf32>
    %cst_47 = arith.constant 1.250000e-01 : f32
    %166 = vector.broadcast %cst_47 : f32 to vector<2x32xf32>
    %167 = arith.mulf %165, %166 : vector<2x32xf32>
    %c0_48 = arith.constant 0 : index
    %c0_49 = arith.constant 0 : index
    %168 = vector.load %arg5[%c0_48, %c0_49] : memref<32x2xf32, #tpu.memory_space<vmem>>, vector<32x2xf32>
    %cst_50 = arith.constant dense<0.000000e+00> : vector<2x2xf32>
    %169 = tpu.matmul %167, %168, %cst_50 {dimension_numbers = #tpu.dot_dimension_numbers<[1], [0], [0], [1], [0, 0, 1, 1], [], []>} : vector<2x32xf32>, vector<32x2xf32>, vector<2x2xf32> -> vector<2x2xf32>
    %c0_51 = arith.constant 0 : index
    %c0_52 = arith.constant 0 : index
    %170 = vector.load %arg6[%c0_51, %c0_52] : memref<1x2xf32, #tpu.memory_space<vmem>>, vector<1x2xf32>
    %171 = vector.broadcast %170 : vector<1x2xf32> to vector<2x2xf32>
    %172 = arith.addf %169, %171 : vector<2x2xf32>
    %c0_53 = arith.constant 0 : index
    %c0_54 = arith.constant 0 : index
    %173 = vector.load %arg7[%c0_53, %c0_54] : memref<2x2xf32, #tpu.memory_space<vmem>>, vector<2x2xf32>
    tpu.vector_store %arg7[%c0_53, %c0_54], %172 {strides = array<i32>} : memref<2x2xf32, #tpu.memory_space<vmem>>, vector<2x2xf32>,
    return
  }
  func.func @transform_0(%arg0: i32) -> (i32, i32) {
    %c0_i32 = arith.constant 0 : i32
    %c0_i32_0 = arith.constant 0 : i32
    %c0_i32_1 = arith.constant 0 : i32
    return %c0_i32, %c0_i32_0 : i32, i32
  }
  func.func @transform_1(%arg0: i32) -> (i32, i32) {
    %c0_i32 = arith.constant 0 : i32
    %c0_i32_0 = arith.constant 0 : i32
    %c0_i32_1 = arith.constant 0 : i32
    return %c0_i32, %c0_i32_0 : i32, i32
  }
  func.func @transform_2(%arg0: i32) -> (i32, i32) {
    %c0_i32 = arith.constant 0 : i32
    %c0_i32_0 = arith.constant 0 : i32
    %c0_i32_1 = arith.constant 0 : i32
    return %c0_i32, %c0_i32_0 : i32, i32
  }
  func.func @transform_3(%arg0: i32) -> (i32, i32) {
    %c0_i32 = arith.constant 0 : i32
    %c0_i32_0 = arith.constant 0 : i32
    %c0_i32_1 = arith.constant 0 : i32
    return %c0_i32, %c0_i32_0 : i32, i32
  }
  func.func @transform_4(%arg0: i32) -> (i32, i32) {
    %c0_i32 = arith.constant 0 : i32
    %c0_i32_0 = arith.constant 0 : i32
    %c0_i32_1 = arith.constant 0 : i32
    return %c0_i32, %c0_i32_0 : i32, i32
  }
  func.func @transform_5(%arg0: i32) -> (i32, i32) {
    %c0_i32 = arith.constant 0 : i32
    %c0_i32_0 = arith.constant 0 : i32
    %c0_i32_1 = arith.constant 0 : i32
    return %c0_i32, %c0_i32_0 : i32, i32
  }
  func.func @transform_6(%arg0: i32) -> (i32, i32) {
    %c0_i32 = arith.constant 0 : i32
    %c0_i32_0 = arith.constant 0 : i32
    %c0_i32_1 = arith.constant 0 : i32
    return %c0_i32, %c0_i32_0 : i32, i32
  }
}

</mosaic_0001>

<llo_original>
// kernel: tpu_custom_call.1
$region0: #{tpu_custom_call.1}
  #allocation0 [shape = 'u32[]', space=smem, size = 0x4, offset = 0x4, fixed_abs, tag = 'smem constant byte address 0x4 - core index']
  #allocation1 [shape = 'u32[144,128]{1,0:T(1,128)}', space=vmem, size = 0x12000, scoped, tag = 'internal scratch']
  #allocation2 [shape = 'f32[16,128]{1,0:T(8,128)}', space=vmem, size = 0x2000, scoped, tag = 'scratch operand']
  %s0 = inlined_call_operand.hbm [shape: f32[16,32], index: 0, kind: input, shape index: {}]
  %s1 = inlined_call_operand.vmem [shape: f32[32,128], index: 1, kind: input, shape index: {}]
  %s2 = inlined_call_operand.hbm [shape: f32[32,128], index: 2, kind: input, shape index: {}]
  %s3 = inlined_call_operand.vmem [shape: f32[1,128], index: 3, kind: input, shape index: {}]
  %s4 = inlined_call_operand.vmem [shape: f32[32,2], index: 4, kind: input, shape index: {}]
  %s5 = inlined_call_operand.vmem [shape: f32[1,2], index: 5, kind: input, shape index: {}]
  %s6 = inlined_call_operand.hbm [shape: f32[2,2], index: 6, kind: output, shape index: {}]
  %s7 = sld [smem:[#allocation0]]
  $region42: #{tpu_custom_call.1} parent=0
    _
  %s9 = ssub.s32 1, %s7
  %s10 = scalar_select 0, %s9, %s7
  $region1: #{tpu_custom_call.1} parent=0
    #allocation3 [shape = 'u8[8192]{0}', space=vmem, size = 0x2000, scoped, tag = 'input window, operand 0, single buffered']
    #allocation4 [shape = 's32[1]{0}', space=sflag, size = 0x4, scoped, tag = 'scoped memory for tpu_custom_call.1']
    #allocation5 [shape = 's32[1]{0}', space=sflag, size = 0x4, scoped, tag = 'scoped memory for tpu_custom_call.1']
    #allocation6 [shape = 'u8[16384]{0}', space=vmem, size = 0x4000, scoped, tag = 'input window, operand 2, single buffered']
    #allocation7 [shape = 's32[1]{0}', space=sflag, size = 0x4, scoped, tag = 'scoped memory for tpu_custom_call.1']
    #allocation8 [shape = 'u8[1024]{0}', space=vmem, size = 0x400, scoped, tag = 'output window, operand 0, single buffered']
    %11 = vsyncpa [#allocation4], 0
    %12 = vsyncpa [#allocation7], 0
    %13 = vsyncpa [#allocation5], 0
    // Predicated region
    $region2: #{tpu_custom_call.1} parent=1 // pred_check
      _
    $region3: #{tpu_custom_call.1} parent=1 // pred_check_branch
      %15 = sbr.rel (0) target = $region5
    $region4: #{tpu_custom_call.1} parent=1 // pred_region
      %s17 = ssub.s32 256, 256
      %18 = vsyncadd [#allocation4], %s17
      %s19 = sshll.u32 [#allocation3], 4
      %s20 = int_to_ptr.vmem [resolvable:$true] %s19
      %25 = dma.hbm_to_vmem [thread:$0]  %s0, 256, %s20, [#allocation4], 128, 128, 8
    $region5: #{tpu_custom_call.1} parent=1 // pred_fallthru
      _
    // Predicated region
    $region6: #{tpu_custom_call.1} parent=1 // pred_check
      _
    $region7: #{tpu_custom_call.1} parent=1 // pred_check_branch
      %27 = sbr.rel (0) target = $region9
    $region8: #{tpu_custom_call.1} parent=1 // pred_region
      _
    $region9: #{tpu_custom_call.1} parent=1 // pred_fallthru
      _
    // Predicated region
    $region10: #{tpu_custom_call.1} parent=1 // pred_check
      _
    $region11: #{tpu_custom_call.1} parent=1 // pred_check_branch
      %29 = sbr.rel (0) target = $region13
    $region12: #{tpu_custom_call.1} parent=1 // pred_region
      %s31 = ssub.s32 512, 512
      %32 = vsyncadd [#allocation7], %s31
      %s33 = sshll.u32 [#allocation6], 4
      %s34 = int_to_ptr.vmem [resolvable:$true] %s33
      %39 = dma.hbm_to_vmem [thread:$0]  %s2, 512, %s34, [#allocation7], 128, 128, 8
    $region13: #{tpu_custom_call.1} parent=1 // pred_fallthru
      _
    // Predicated region
    $region14: #{tpu_custom_call.1} parent=1 // pred_check
      _
    $region15: #{tpu_custom_call.1} parent=1 // pred_check_branch
      %41 = sbr.rel (0) target = $region17
    $region16: #{tpu_custom_call.1} parent=1 // pred_region
      _
    $region17: #{tpu_custom_call.1} parent=1 // pred_fallthru
      _
    // Predicated region
    $region18: #{tpu_custom_call.1} parent=1 // pred_check
      _
    $region19: #{tpu_custom_call.1} parent=1 // pred_check_branch
      %43 = sbr.rel (0) target = $region21
    $region20: #{tpu_custom_call.1} parent=1 // pred_region
      _
    $region21: #{tpu_custom_call.1} parent=1 // pred_fallthru
      _
    // Predicated region
    $region22: #{tpu_custom_call.1} parent=1 // pred_check
      _
    $region23: #{tpu_custom_call.1} parent=1 // pred_check_branch
      %45 = sbr.rel (0) target = $region25
    $region24: #{tpu_custom_call.1} parent=1 // pred_region
      _
    $region25: #{tpu_custom_call.1} parent=1 // pred_fallthru
      _
    // Predicated region
    $region26: #{tpu_custom_call.1} parent=1 // pred_check
      _
    $region27: #{tpu_custom_call.1} parent=1 // pred_check_branch
      %47 = sbr.rel (0) target = $region29
    $region28: #{tpu_custom_call.1} parent=1 // pred_region
      %48 = dma.done [#allocation4], 256
    $region29: #{tpu_custom_call.1} parent=1 // pred_fallthru
      _
    // Predicated region
    $region30: #{tpu_custom_call.1} parent=1 // pred_check
      _
    $region31: #{tpu_custom_call.1} parent=1 // pred_check_branch
      %50 = sbr.rel (0) target = $region33
    $region32: #{tpu_custom_call.1} parent=1 // pred_region
      %51 = dma.done [#allocation7], 512
    $region33: #{tpu_custom_call.1} parent=1 // pred_fallthru
      _
    %v52 = vld [vmem:[#allocation3] sm:$0xff]
    %v53 = vld [vmem:[#allocation3 + $0x8] sm:$0xff]
    %v54 = vld [vmem:[%s1] sm:$0xff]
    %v55 = vld [vmem:[%s1 + $0x8] sm:$0xff]
    %v56 = vld [vmem:[%s1 + $0x10] sm:$0xff]
    %v57 = vld [vmem:[%s1 + $0x18] sm:$0xff]
    %v58 = vld [vmem:[%s3] sm:$0x1]
    %v60 = vlaneseq
    %v61 = vshrl.u32 %v60, 7
    %v62 = vsub.s32 0, %v61
    %v63 = vrot.slane %v58, %v62
    %vm65 = vcmask 261120
    %v67 = vsel %vm65, %v52, 0
    %v70 = vsel %vm65, %v53, 0
    %72 = vmatprep.subr.mxu0 0.0
    %73 = vmatpush1.msra.mxu0 %v54
    %74 = vmatprep.subr.mxu0 0.0
    %75 = vmatpush1.msra.mxu0 %v55
    %76 = vmatprep.subr.mxu0 0.0
    %77 = vmatpush1.msra.mxu0 %v56
    %78 = vmatprep.subr.mxu0 0.0
    %79 = vmatpush1.msra.mxu0 %v57
    %80 = vmatprep.subr.mxu0 0.0
    %81 = vmatpush1.msra.mxu0 0.0
    %82 = vmatprep.subr.mxu0 0.0
    %83 = vmatpush1.msra.mxu0 0.0
    %84 = vmatprep.subr.mxu0 0.0
    %85 = vmatpush1.msra.mxu0 0.0
    %86 = vmatprep.subr.mxu0 0.0
    %87 = vmatpush1.msra.mxu0 0.0
    %88 = vmatprep.subr.mxu0 0.0
    %89 = vmatpush1.msra.mxu0 0.0
    %90 = vmatprep.subr.mxu0 0.0
    %91 = vmatpush1.msra.mxu0 0.0
    %92 = vmatprep.subr.mxu0 0.0
    %93 = vmatpush1.msra.mxu0 0.0
    %94 = vmatprep.subr.mxu0 0.0
    %95 = vmatpush1.msra.mxu0 0.0
    %96 = vmatprep.subr.mxu0 0.0
    %97 = vmatpush1.msra.mxu0 0.0
    %98 = vmatprep.subr.mxu0 0.0
    %99 = vmatpush1.msra.mxu0 0.0
    %100 = vmatprep.subr.mxu0 0.0
    %101 = vmatpush1.msra.mxu0 0.0
    %102 = vmatprep.subr.mxu0 0.0
    %103 = vmatpush1.msra.mxu0 0.0
    %104 = vmatprep.subr.mxu0 0.0
    %105 = vmatpush1.msra.mxu0 0.0
    %106 = vmatprep.subr.mxu0 0.0
    %107 = vmatpush1.msra.mxu0 0.0
    %108 = vmatprep.subr.mxu0 0.0
    %109 = vmatpush1.msra.mxu0 0.0
    %110 = vmatprep.subr.mxu0 0.0
    %111 = vmatpush1.msra.mxu0 0.0
    %112 = vmatprep.subr.mxu0 0.0
    %113 = vmatpush1.msra.mxu0 0.0
    %114 = vmatprep.subr.mxu0 0.0
    %115 = vmatpush1.msra.mxu0 0.0
    %116 = vmatprep.subr.mxu0 0.0
    %117 = vmatpush1.msra.mxu0 0.0
    %118 = vmatprep.subr.mxu0 0.0
    %119 = vmatpush1.msra.mxu0 0.0
    %120 = vmatprep.subr.mxu0 0.0
    %121 = vmatpush1.msra.mxu0 0.0
    %122 = vmatprep.subr.mxu0 0.0
    %123 = vmatpush1.msra.mxu0 0.0
    %124 = vmatprep.subr.mxu0 0.0
    %125 = vmatpush1.msra.mxu0 0.0
    %126 = vmatprep.subr.mxu0 0.0
    %127 = vmatpush1.msra.mxu0 0.0
    %128 = vmatprep.subr.mxu0 0.0
    %129 = vmatpush1.msra.mxu0 0.0
    %130 = vmatprep.subr.mxu0 0.0
    %131 = vmatpush1.msra.mxu0 0.0
    %132 = vmatprep.subr.mxu0 0.0
    %133 = vmatpush1.msra.mxu0 0.0
    %134 = vmatprep.subr.mxu0 0.0
    %135 = vmatpush1.msra.mxu0 0.0
    %136 = vmatprep.mubr.f32.mxu0 0.0
    %137 = vmatmul.mubr.f32.gmra.mrb[0].mxu0 %v67
    %v138 = vpop.f32.mrb[0].mxu0
    %v139 = vadd.f32 %v63, %v138
    %v140 = vpop.f32.mrb[0].mxu0
    %141 = vmatprep.mubr.f32.mxu0 0.0
    %142 = vmatmul.mubr.f32.gmra.mrb[0].mxu0 %v70
    %v143 = vpop.f32.mrb[0].mxu0
    %v144 = vadd.f32 %v63, %v143
    %v145 = vpop.f32.mrb[0].mxu0
    %146 = vdwg.mxu0
    %147 = vst [vmem:[#allocation2] sm:$0xff] %v139
    %148 = vst [vmem:[#allocation2 + $0x8] sm:$0xff] %v144
    %v149 = vlaneseq
    %v150 = vand.u32 %v149, 127
    %vm151 = vcmp.ge.s32.totalorder %v150, 64
    %vm152 = vcmp.lt.s32.totalorder %v150, 96
    %vm153 = vmand %vm151, %vm152
    %v154 = vsel %vm153, 1.0, 0.5
    %v155 = vsel %vm153, 0.0, 0.5
    %v156 = vld [vmem:[#allocation2] ss:$8 sm:$0x3]
    %v157 = vld [vmem:[#allocation6] sm:$0xff]
    %v158 = vld [vmem:[#allocation6 + $0x8] sm:$0xff]
    %v159 = vld [vmem:[#allocation6 + $0x10] sm:$0xff]
    %v160 = vld [vmem:[#allocation6 + $0x18] sm:$0xff]
    %v162 = vsel %vm65, 0.0, 0
    %164 = vmatprep.subr.mxu0 0.0
    %165 = vmatpush1.msra.mxu0 %v157
    %166 = vmatprep.subr.mxu0 0.0
    %167 = vmatpush1.msra.mxu0 %v158
    %168 = vmatprep.subr.mxu0 0.0
    %169 = vmatpush1.msra.mxu0 %v159
    %170 = vmatprep.subr.mxu0 0.0
    %171 = vmatpush1.msra.mxu0 %v160
    %172 = vmatprep.subr.mxu0 0.0
    %173 = vmatpush1.msra.mxu0 0.0
    %174 = vmatprep.subr.mxu0 0.0
    %175 = vmatpush1.msra.mxu0 0.0
    %176 = vmatprep.subr.mxu0 0.0
    %177 = vmatpush1.msra.mxu0 0.0
    %178 = vmatprep.subr.mxu0 0.0
    %179 = vmatpush1.msra.mxu0 0.0
    %180 = vmatprep.subr.mxu0 0.0
    %181 = vmatpush1.msra.mxu0 0.0
    %182 = vmatprep.subr.mxu0 0.0
    %183 = vmatpush1.msra.mxu0 0.0
    %184 = vmatprep.subr.mxu0 0.0
    %185 = vmatpush1.msra.mxu0 0.0
    %186 = vmatprep.subr.mxu0 0.0
    %187 = vmatpush1.msra.mxu0 0.0
    %188 = vmatprep.subr.mxu0 0.0
    %189 = vmatpush1.msra.mxu0 0.0
    %190 = vmatprep.subr.mxu0 0.0
    %191 = vmatpush1.msra.mxu0 0.0
    %192 = vmatprep.subr.mxu0 0.0
    %193 = vmatpush1.msra.mxu0 0.0
    %194 = vmatprep.subr.mxu0 0.0
    %195 = vmatpush1.msra.mxu0 0.0
    %196 = vmatprep.subr.mxu0 0.0
    %197 = vmatpush1.msra.mxu0 0.0
    %198 = vmatprep.subr.mxu0 0.0
    %199 = vmatpush1.msra.mxu0 0.0
    %200 = vmatprep.subr.mxu0 0.0
    %201 = vmatpush1.msra.mxu0 0.0
    %202 = vmatprep.subr.mxu0 0.0
    %203 = vmatpush1.msra.mxu0 0.0
    %204 = vmatprep.subr.mxu0 0.0
    %205 = vmatpush1.msra.mxu0 0.0
    %206 = vmatprep.subr.mxu0 0.0
    %207 = vmatpush1.msra.mxu0 0.0
    %208 = vmatprep.subr.mxu0 0.0
    %209 = vmatpush1.msra.mxu0 0.0
    %210 = vmatprep.subr.mxu0 0.0
    %211 = vmatpush1.msra.mxu0 0.0
    %212 = vmatprep.subr.mxu0 0.0
    %213 = vmatpush1.msra.mxu0 0.0
    %214 = vmatprep.subr.mxu0 0.0
    %215 = vmatpush1.msra.mxu0 0.0
    %216 = vmatprep.subr.mxu0 0.0
    %217 = vmatpush1.msra.mxu0 0.0
    %218 = vmatprep.subr.mxu0 0.0
    %219 = vmatpush1.msra.mxu0 0.0
    %220 = vmatprep.subr.mxu0 0.0
    %221 = vmatpush1.msra.mxu0 0.0
    %222 = vmatprep.subr.mxu0 0.0
    %223 = vmatpush1.msra.mxu0 0.0
    %224 = vmatprep.subr.mxu0 0.0
    %225 = vmatpush1.msra.mxu0 0.0
    %226 = vmatprep.subr.mxu0 0.0
    %227 = vmatpush1.msra.mxu0 0.0
    %228 = vmatprep.mubr.f32.mxu0 0.0
    %229 = vmatmul.mubr.f32.gmra.mrb[0].mxu0 %v162
    %v230 = vpop.f32.mrb[0].mxu0
    %v231 = vadd.f32 0.0, %v230
    %v232 = vpop.f32.mrb[0].mxu0
    %233 = vdwg.mxu0
    %v234 = vadd.f32 %v156, %v231
    %v235 = vmul.f32 %v154, %v234
    %v236 = vtanh.pop %v235
    %v237 = vmul.f32 %v154, %v236
    %v238 = vadd.f32 %v237, %v155
    %v239 = vmul.f32 %v238, 0.0
    %241 = vrot.lane.b32.xlu0 %v238, 64
    %v242 = vpop.permute.xlu0 %241
    %v244 = vmul.f32 %v238, %v242
    %246 = vrot.lane.b32.xlu0 %v244, 32
    %v247 = vpop.permute.xlu0 %246
    %v249 = vadd.f32 %v239, %v247
    %v250 = vtanh.pop %v249
    %252 = vrot.lane.b32.xlu0 %v250, 64
    %v253 = vpop.permute.xlu0 %252
    %v255 = vmul.f32 %v238, %v253
    %v256 = vadd.f32 %v255, 0.0
    %s257 = scalar_lea.vmem [#allocation2], 1
    %v258 = vld [vmem:[%s257] ss:$8 sm:$0x3]
    %260 = vrot.lane.b32.xlu0 %v255, 32
    %v261 = vpop.permute.xlu0 %260
    %v262 = vsel %vm65, %v261, 0
    %264 = vmatprep.subr.mxu0 0.0
    %265 = vmatpush1.msra.mxu0 %v157
    %266 = vmatprep.subr.mxu0 0.0
    %267 = vmatpush1.msra.mxu0 %v158
    %268 = vmatprep.subr.mxu0 0.0
    %269 = vmatpush1.msra.mxu0 %v159
    %270 = vmatprep.subr.mxu0 0.0
    %271 = vmatpush1.msra.mxu0 %v160
    %272 = vmatprep.subr.mxu0 0.0
    %273 = vmatpush1.msra.mxu0 0.0
    %274 = vmatprep.subr.mxu0 0.0
    %275 = vmatpush1.msra.mxu0 0.0
    %276 = vmatprep.subr.mxu0 0.0
    %277 = vmatpush1.msra.mxu0 0.0
    %278 = vmatprep.subr.mxu0 0.0
    %279 = vmatpush1.msra.mxu0 0.0
    %280 = vmatprep.subr.mxu0 0.0
    %281 = vmatpush1.msra.mxu0 0.0
    %282 = vmatprep.subr.mxu0 0.0
    %283 = vmatpush1.msra.mxu0 0.0
    %284 = vmatprep.subr.mxu0 0.0
    %285 = vmatpush1.msra.mxu0 0.0
    %286 = vmatprep.subr.mxu0 0.0
    %287 = vmatpush1.msra.mxu0 0.0
    %288 = vmatprep.subr.mxu0 0.0
    %289 = vmatpush1.msra.mxu0 0.0
    %290 = vmatprep.subr.mxu0 0.0
    %291 = vmatpush1.msra.mxu0 0.0
    %292 = vmatprep.subr.mxu0 0.0
    %293 = vmatpush1.msra.mxu0 0.0
    %294 = vmatprep.subr.mxu0 0.0
    %295 = vmatpush1.msra.mxu0 0.0
    %296 = vmatprep.subr.mxu0 0.0
    %297 = vmatpush1.msra.mxu0 0.0
    %298 = vmatprep.subr.mxu0 0.0
    %299 = vmatpush1.msra.mxu0 0.0
    %300 = vmatprep.subr.mxu0 0.0
    %301 = vmatpush1.msra.mxu0 0.0
    %302 = vmatprep.subr.mxu0 0.0
    %303 = vmatpush1.msra.mxu0 0.0
    %304 = vmatprep.subr.mxu0 0.0
    %305 = vmatpush1.msra.mxu0 0.0
    %306 = vmatprep.subr.mxu0 0.0
    %307 = vmatpush1.msra.mxu0 0.0
    %308 = vmatprep.subr.mxu0 0.0
    %309 = vmatpush1.msra.mxu0 0.0
    %310 = vmatprep.subr.mxu0 0.0
    %311 = vmatpush1.msra.mxu0 0.0
    %312 = vmatprep.subr.mxu0 0.0
    %313 = vmatpush1.msra.mxu0 0.0
    %314 = vmatprep.subr.mxu0 0.0
    %315 = vmatpush1.msra.mxu0 0.0
    %316 = vmatprep.subr.mxu0 0.0
    %317 = vmatpush1.msra.mxu0 0.0
    %318 = vmatprep.subr.mxu0 0.0
    %319 = vmatpush1.msra.mxu0 0.0
    %320 = vmatprep.subr.mxu0 0.0
    %321 = vmatpush1.msra.mxu0 0.0
    %322 = vmatprep.subr.mxu0 0.0
    %323 = vmatpush1.msra.mxu0 0.0
    %324 = vmatprep.subr.mxu0 0.0
    %325 = vmatpush1.msra.mxu0 0.0
    %326 = vmatprep.subr.mxu0 0.0
    %327 = vmatpush1.msra.mxu0 0.0
    %328 = vmatprep.mubr.f32.mxu0 0.0
    %329 = vmatmul.mubr.f32.gmra.mrb[0].mxu0 %v262
    %v330 = vpop.f32.mrb[0].mxu0
    %v331 = vadd.f32 0.0, %v330
    %v332 = vpop.f32.mrb[0].mxu0
    %333 = vdwg.mxu0
    %v334 = vadd.f32 %v258, %v331
    %v335 = vmul.f32 %v154, %v334
    %v336 = vtanh.pop %v335
    %v337 = vmul.f32 %v154, %v336
    %v338 = vadd.f32 %v337, %v155
    %v339 = vmul.f32 %v338, %v249
    %341 = vrot.lane.b32.xlu0 %v338, 64
    %v342 = vpop.permute.xlu0 %341
    %v344 = vmul.f32 %v338, %v342
    %346 = vrot.lane.b32.xlu0 %v344, 32
    %v347 = vpop.permute.xlu0 %346
    %v349 = vadd.f32 %v339, %v347
    %v350 = vtanh.pop %v349
    %352 = vrot.lane.b32.xlu0 %v350, 64
    %v353 = vpop.permute.xlu0 %352
    %v355 = vmul.f32 %v338, %v353
    %v356 = vadd.f32 %v256, %v355
    %s357 = scalar_lea.vmem [#allocation2], 2
    %v358 = vld [vmem:[%s357] ss:$8 sm:$0x3]
    %360 = vrot.lane.b32.xlu0 %v355, 32
    %v361 = vpop.permute.xlu0 %360
    %v362 = vsel %vm65, %v361, 0
    %364 = vmatprep.subr.mxu0 0.0
    %365 = vmatpush1.msra.mxu0 %v157
    %366 = vmatprep.subr.mxu0 0.0
    %367 = vmatpush1.msra.mxu0 %v158
    %368 = vmatprep.subr.mxu0 0.0
    %369 = vmatpush1.msra.mxu0 %v159
    %370 = vmatprep.subr.mxu0 0.0
    %371 = vmatpush1.msra.mxu0 %v160
    %372 = vmatprep.subr.mxu0 0.0
    %373 = vmatpush1.msra.mxu0 0.0
    %374 = vmatprep.subr.mxu0 0.0
    %375 = vmatpush1.msra.mxu0 0.0
    %376 = vmatprep.subr.mxu0 0.0
    %377 = vmatpush1.msra.mxu0 0.0
    %378 = vmatprep.subr.mxu0 0.0
    %379 = vmatpush1.msra.mxu0 0.0
    %380 = vmatprep.subr.mxu0 0.0
    %381 = vmatpush1.msra.mxu0 0.0
    %382 = vmatprep.subr.mxu0 0.0
    %383 = vmatpush1.msra.mxu0 0.0
    %384 = vmatprep.subr.mxu0 0.0
    %385 = vmatpush1.msra.mxu0 0.0
    %386 = vmatprep.subr.mxu0 0.0
    %387 = vmatpush1.msra.mxu0 0.0
    %388 = vmatprep.subr.mxu0 0.0
    %389 = vmatpush1.msra.mxu0 0.0
    %390 = vmatprep.subr.mxu0 0.0
    %391 = vmatpush1.msra.mxu0 0.0
    %392 = vmatprep.subr.mxu0 0.0
    %393 = vmatpush1.msra.mxu0 0.0
    %394 = vmatprep.subr.mxu0 0.0
    %395 = vmatpush1.msra.mxu0 0.0
    %396 = vmatprep.subr.mxu0 0.0
    %397 = vmatpush1.msra.mxu0 0.0
    %398 = vmatprep.subr.mxu0 0.0
    %399 = vmatpush1.msra.mxu0 0.0
    %400 = vmatprep.subr.mxu0 0.0
    %401 = vmatpush1.msra.mxu0 0.0
    %402 = vmatprep.subr.mxu0 0.0
    %403 = vmatpush1.msra.mxu0 0.0
    %404 = vmatprep.subr.mxu0 0.0
    %405 = vmatpush1.msra.mxu0 0.0
    %406 = vmatprep.subr.mxu0 0.0
    %407 = vmatpush1.msra.mxu0 0.0
    %408 = vmatprep.subr.mxu0 0.0
    %409 = vmatpush1.msra.mxu0 0.0
    %410 = vmatprep.subr.mxu0 0.0
    %411 = vmatpush1.msra.mxu0 0.0
    %412 = vmatprep.subr.mxu0 0.0
    %413 = vmatpush1.msra.mxu0 0.0
    %414 = vmatprep.subr.mxu0 0.0
    %415 = vmatpush1.msra.mxu0 0.0
    %416 = vmatprep.subr.mxu0 0.0
    %417 = vmatpush1.msra.mxu0 0.0
    %418 = vmatprep.subr.mxu0 0.0
    %419 = vmatpush1.msra.mxu0 0.0
    %420 = vmatprep.subr.mxu0 0.0
    %421 = vmatpush1.msra.mxu0 0.0
    %422 = vmatprep.subr.mxu0 0.0
    %423 = vmatpush1.msra.mxu0 0.0
    %424 = vmatprep.subr.mxu0 0.0
    %425 = vmatpush1.msra.mxu0 0.0
    %426 = vmatprep.subr.mxu0 0.0
    %427 = vmatpush1.msra.mxu0 0.0
    %428 = vmatprep.mubr.f32.mxu0 0.0
    %429 = vmatmul.mubr.f32.gmra.mrb[0].mxu0 %v362
    %v430 = vpop.f32.mrb[0].mxu0
    %v431 = vadd.f32 0.0, %v430
    %v432 = vpop.f32.mrb[0].mxu0
    %433 = vdwg.mxu0
    %v434 = vadd.f32 %v358, %v431
    %v435 = vmul.f32 %v154, %v434
    %v436 = vtanh.pop %v435
    %v437 = vmul.f32 %v154, %v436
    %v438 = vadd.f32 %v437, %v155
    %v439 = vmul.f32 %v438, %v349
    %441 = vrot.lane.b32.xlu0 %v438, 64
    %v442 = vpop.permute.xlu0 %441
    %v444 = vmul.f32 %v438, %v442
    %446 = vrot.lane.b32.xlu0 %v444, 32
    %v447 = vpop.permute.xlu0 %446
    %v449 = vadd.f32 %v439, %v447
    %v450 = vtanh.pop %v449
    %452 = vrot.lane.b32.xlu0 %v450, 64
    %v453 = vpop.permute.xlu0 %452
    %v455 = vmul.f32 %v438, %v453
    %v456 = vadd.f32 %v356, %v455
    %s457 = scalar_lea.vmem [#allocation2], 3
    %v458 = vld [vmem:[%s457] ss:$8 sm:$0x3]
    %460 = vrot.lane.b32.xlu0 %v455, 32
    %v461 = vpop.permute.xlu0 %460
    %v462 = vsel %vm65, %v461, 0
    %464 = vmatprep.subr.mxu0 0.0
    %465 = vmatpush1.msra.mxu0 %v157
    %466 = vmatprep.subr.mxu0 0.0
    %467 = vmatpush1.msra.mxu0 %v158
    %468 = vmatprep.subr.mxu0 0.0
    %469 = vmatpush1.msra.mxu0 %v159
    %470 = vmatprep.subr.mxu0 0.0
    %471 = vmatpush1.msra.mxu0 %v160
    %472 = vmatprep.subr.mxu0 0.0
    %473 = vmatpush1.msra.mxu0 0.0
    %474 = vmatprep.subr.mxu0 0.0
    %475 = vmatpush1.msra.mxu0 0.0
    %476 = vmatprep.subr.mxu0 0.0
    %477 = vmatpush1.msra.mxu0 0.0
    %478 = vmatprep.subr.mxu0 0.0
    %479 = vmatpush1.msra.mxu0 0.0
    %480 = vmatprep.subr.mxu0 0.0
    %481 = vmatpush1.msra.mxu0 0.0
    %482 = vmatprep.subr.mxu0 0.0
    %483 = vmatpush1.msra.mxu0 0.0
    %484 = vmatprep.subr.mxu0 0.0
    %485 = vmatpush1.msra.mxu0 0.0
    %486 = vmatprep.subr.mxu0 0.0
    %487 = vmatpush1.msra.mxu0 0.0
    %488 = vmatprep.subr.mxu0 0.0
    %489 = vmatpush1.msra.mxu0 0.0
    %490 = vmatprep.subr.mxu0 0.0
    %491 = vmatpush1.msra.mxu0 0.0
    %492 = vmatprep.subr.mxu0 0.0
    %493 = vmatpush1.msra.mxu0 0.0
    %494 = vmatprep.subr.mxu0 0.0
    %495 = vmatpush1.msra.mxu0 0.0
    %496 = vmatprep.subr.mxu0 0.0
    %497 = vmatpush1.msra.mxu0 0.0
    %498 = vmatprep.subr.mxu0 0.0
    %499 = vmatpush1.msra.mxu0 0.0
    %500 = vmatprep.subr.mxu0 0.0
    %501 = vmatpush1.msra.mxu0 0.0
    %502 = vmatprep.subr.mxu0 0.0
    %503 = vmatpush1.msra.mxu0 0.0
    %504 = vmatprep.subr.mxu0 0.0
    %505 = vmatpush1.msra.mxu0 0.0
    %506 = vmatprep.subr.mxu0 0.0
    %507 = vmatpush1.msra.mxu0 0.0
    %508 = vmatprep.subr.mxu0 0.0
    %509 = vmatpush1.msra.mxu0 0.0
    %510 = vmatprep.subr.mxu0 0.0
    %511 = vmatpush1.msra.mxu0 0.0
    %512 = vmatprep.subr.mxu0 0.0
    %513 = vmatpush1.msra.mxu0 0.0
    %514 = vmatprep.subr.mxu0 0.0
    %515 = vmatpush1.msra.mxu0 0.0
    %516 = vmatprep.subr.mxu0 0.0
    %517 = vmatpush1.msra.mxu0 0.0
    %518 = vmatprep.subr.mxu0 0.0
    %519 = vmatpush1.msra.mxu0 0.0
    %520 = vmatprep.subr.mxu0 0.0
    %521 = vmatpush1.msra.mxu0 0.0
    %522 = vmatprep.subr.mxu0 0.0
    %523 = vmatpush1.msra.mxu0 0.0
    %524 = vmatprep.subr.mxu0 0.0
    %525 = vmatpush1.msra.mxu0 0.0
    %526 = vmatprep.subr.mxu0 0.0
    %527 = vmatpush1.msra.mxu0 0.0
    %528 = vmatprep.mubr.f32.mxu0 0.0
    %529 = vmatmul.mubr.f32.gmra.mrb[0].mxu0 %v462
    %v530 = vpop.f32.mrb[0].mxu0
    %v531 = vadd.f32 0.0, %v530
    %v532 = vpop.f32.mrb[0].mxu0
    %533 = vdwg.mxu0
    %v534 = vadd.f32 %v458, %v531
    %v535 = vmul.f32 %v154, %v534
    %v536 = vtanh.pop %v535
    %v537 = vmul.f32 %v154, %v536
    %v538 = vadd.f32 %v537, %v155
    %v539 = vmul.f32 %v538, %v449
    %541 = vrot.lane.b32.xlu0 %v538, 64
    %v542 = vpop.permute.xlu0 %541
    %v544 = vmul.f32 %v538, %v542
    %546 = vrot.lane.b32.xlu0 %v544, 32
    %v547 = vpop.permute.xlu0 %546
    %v549 = vadd.f32 %v539, %v547
    %v550 = vtanh.pop %v549
    %552 = vrot.lane.b32.xlu0 %v550, 64
    %v553 = vpop.permute.xlu0 %552
    %v555 = vmul.f32 %v538, %v553
    %v556 = vadd.f32 %v456, %v555
    %s557 = scalar_lea.vmem [#allocation2], 4
    %v558 = vld [vmem:[%s557] ss:$8 sm:$0x3]
    %560 = vrot.lane.b32.xlu0 %v555, 32
    %v561 = vpop.permute.xlu0 %560
    %v562 = vsel %vm65, %v561, 0
    %564 = vmatprep.subr.mxu0 0.0
    %565 = vmatpush1.msra.mxu0 %v157
    %566 = vmatprep.subr.mxu0 0.0
    %567 = vmatpush1.msra.mxu0 %v158
    %568 = vmatprep.subr.mxu0 0.0
    %569 = vmatpush1.msra.mxu0 %v159
    %570 = vmatprep.subr.mxu0 0.0
    %571 = vmatpush1.msra.mxu0 %v160
    %572 = vmatprep.subr.mxu0 0.0
    %573 = vmatpush1.msra.mxu0 0.0
    %574 = vmatprep.subr.mxu0 0.0
    %575 = vmatpush1.msra.mxu0 0.0
    %576 = vmatprep.subr.mxu0 0.0
    %577 = vmatpush1.msra.mxu0 0.0
    %578 = vmatprep.subr.mxu0 0.0
    %579 = vmatpush1.msra.mxu0 0.0
    %580 = vmatprep.subr.mxu0 0.0
    %581 = vmatpush1.msra.mxu0 0.0
    %582 = vmatprep.subr.mxu0 0.0
    %583 = vmatpush1.msra.mxu0 0.0
    %584 = vmatprep.subr.mxu0 0.0
    %585 = vmatpush1.msra.mxu0 0.0
    %586 = vmatprep.subr.mxu0 0.0
    %587 = vmatpush1.msra.mxu0 0.0
    %588 = vmatprep.subr.mxu0 0.0
    %589 = vmatpush1.msra.mxu0 0.0
    %590 = vmatprep.subr.mxu0 0.0
    %591 = vmatpush1.msra.mxu0 0.0
    %592 = vmatprep.subr.mxu0 0.0
    %593 = vmatpush1.msra.mxu0 0.0
    %594 = vmatprep.subr.mxu0 0.0
    %595 = vmatpush1.msra.mxu0 0.0
    %596 = vmatprep.subr.mxu0 0.0
    %597 = vmatpush1.msra.mxu0 0.0
    %598 = vmatprep.subr.mxu0 0.0
    %599 = vmatpush1.msra.mxu0 0.0
    %600 = vmatprep.subr.mxu0 0.0
    %601 = vmatpush1.msra.mxu0 0.0
    %602 = vmatprep.subr.mxu0 0.0
    %603 = vmatpush1.msra.mxu0 0.0
    %604 = vmatprep.subr.mxu0 0.0
    %605 = vmatpush1.msra.mxu0 0.0
    %606 = vmatprep.subr.mxu0 0.0
    %607 = vmatpush1.msra.mxu0 0.0
    %608 = vmatprep.subr.mxu0 0.0
    %609 = vmatpush1.msra.mxu0 0.0
    %610 = vmatprep.subr.mxu0 0.0
    %611 = vmatpush1.msra.mxu0 0.0
    %612 = vmatprep.subr.mxu0 0.0
    %613 = vmatpush1.msra.mxu0 0.0
    %614 = vmatprep.subr.mxu0 0.0
    %615 = vmatpush1.msra.mxu0 0.0
    %616 = vmatprep.subr.mxu0 0.0
    %617 = vmatpush1.msra.mxu0 0.0
    %618 = vmatprep.subr.mxu0 0.0
    %619 = vmatpush1.msra.mxu0 0.0
    %620 = vmatprep.subr.mxu0 0.0
    %621 = vmatpush1.msra.mxu0 0.0
    %622 = vmatprep.subr.mxu0 0.0
    %623 = vmatpush1.msra.mxu0 0.0
    %624 = vmatprep.subr.mxu0 0.0
    %625 = vmatpush1.msra.mxu0 0.0
    %626 = vmatprep.subr.mxu0 0.0
    %627 = vmatpush1.msra.mxu0 0.0
    %628 = vmatprep.mubr.f32.mxu0 0.0
    %629 = vmatmul.mubr.f32.gmra.mrb[0].mxu0 %v562
    %v630 = vpop.f32.mrb[0].mxu0
    %v631 = vadd.f32 0.0, %v630
    %v632 = vpop.f32.mrb[0].mxu0
    %633 = vdwg.mxu0
    %v634 = vadd.f32 %v558, %v631
    %v635 = vmul.f32 %v154, %v634
    %v636 = vtanh.pop %v635
    %v637 = vmul.f32 %v154, %v636
    %v638 = vadd.f32 %v637, %v155
    %v639 = vmul.f32 %v638, %v549
    %641 = vrot.lane.b32.xlu0 %v638, 64
    %v642 = vpop.permute.xlu0 %641
    %v644 = vmul.f32 %v638, %v642
    %646 = vrot.lane.b32.xlu0 %v644, 32
    %v647 = vpop.permute.xlu0 %646
    %v649 = vadd.f32 %v639, %v647
    %v650 = vtanh.pop %v649
    %652 = vrot.lane.b32.xlu0 %v650, 64
    %v653 = vpop.permute.xlu0 %652
    %v655 = vmul.f32 %v638, %v653
    %v656 = vadd.f32 %v556, %v655
    %s657 = scalar_lea.vmem [#allocation2], 5
    %v658 = vld [vmem:[%s657] ss:$8 sm:$0x3]
    %660 = vrot.lane.b32.xlu0 %v655, 32
    %v661 = vpop.permute.xlu0 %660
    %v662 = vsel %vm65, %v661, 0
    %664 = vmatprep.subr.mxu0 0.0
    %665 = vmatpush1.msra.mxu0 %v157
    %666 = vmatprep.subr.mxu0 0.0
    %667 = vmatpush1.msra.mxu0 %v158
    %668 = vmatprep.subr.mxu0 0.0
    %669 = vmatpush1.msra.mxu0 %v159
    %670 = vmatprep.subr.mxu0 0.0
    %671 = vmatpush1.msra.mxu0 %v160
    %672 = vmatprep.subr.mxu0 0.0
    %673 = vmatpush1.msra.mxu0 0.0
    %674 = vmatprep.subr.mxu0 0.0
    %675 = vmatpush1.msra.mxu0 0.0
    %676 = vmatprep.subr.mxu0 0.0
    %677 = vmatpush1.msra.mxu0 0.0
    %678 = vmatprep.subr.mxu0 0.0
    %679 = vmatpush1.msra.mxu0 0.0
    %680 = vmatprep.subr.mxu0 0.0
    %681 = vmatpush1.msra.mxu0 0.0
    %682 = vmatprep.subr.mxu0 0.0
    %683 = vmatpush1.msra.mxu0 0.0
    %684 = vmatprep.subr.mxu0 0.0
    %685 = vmatpush1.msra.mxu0 0.0
    %686 = vmatprep.subr.mxu0 0.0
    %687 = vmatpush1.msra.mxu0 0.0
    %688 = vmatprep.subr.mxu0 0.0
    %689 = vmatpush1.msra.mxu0 0.0
    %690 = vmatprep.subr.mxu0 0.0
    %691 = vmatpush1.msra.mxu0 0.0
    %692 = vmatprep.subr.mxu0 0.0
    %693 = vmatpush1.msra.mxu0 0.0
    %694 = vmatprep.subr.mxu0 0.0
    %695 = vmatpush1.msra.mxu0 0.0
    %696 = vmatprep.subr.mxu0 0.0
    %697 = vmatpush1.msra.mxu0 0.0
    %698 = vmatprep.subr.mxu0 0.0
    %699 = vmatpush1.msra.mxu0 0.0
    %700 = vmatprep.subr.mxu0 0.0
    %701 = vmatpush1.msra.mxu0 0.0
    %702 = vmatprep.subr.mxu0 0.0
    %703 = vmatpush1.msra.mxu0 0.0
    %704 = vmatprep.subr.mxu0 0.0
    %705 = vmatpush1.msra.mxu0 0.0
    %706 = vmatprep.subr.mxu0 0.0
    %707 = vmatpush1.msra.mxu0 0.0
    %708 = vmatprep.subr.mxu0 0.0
    %709 = vmatpush1.msra.mxu0 0.0
    %710 = vmatprep.subr.mxu0 0.0
    %711 = vmatpush1.msra.mxu0 0.0
    %712 = vmatprep.subr.mxu0 0.0
    %713 = vmatpush1.msra.mxu0 0.0
    %714 = vmatprep.subr.mxu0 0.0
    %715 = vmatpush1.msra.mxu0 0.0
    %716 = vmatprep.subr.mxu0 0.0
    %717 = vmatpush1.msra.mxu0 0.0
    %718 = vmatprep.subr.mxu0 0.0
    %719 = vmatpush1.msra.mxu0 0.0
    %720 = vmatprep.subr.mxu0 0.0
    %721 = vmatpush1.msra.mxu0 0.0
    %722 = vmatprep.subr.mxu0 0.0
    %723 = vmatpush1.msra.mxu0 0.0
    %724 = vmatprep.subr.mxu0 0.0
    %725 = vmatpush1.msra.mxu0 0.0
    %726 = vmatprep.subr.mxu0 0.0
    %727 = vmatpush1.msra.mxu0 0.0
    %728 = vmatprep.mubr.f32.mxu0 0.0
    %729 = vmatmul.mubr.f32.gmra.mrb[0].mxu0 %v662
    %v730 = vpop.f32.mrb[0].mxu0
    %v731 = vadd.f32 0.0, %v730
    %v732 = vpop.f32.mrb[0].mxu0
    %733 = vdwg.mxu0
    %v734 = vadd.f32 %v658, %v731
    %v735 = vmul.f32 %v154, %v734
    %v736 = vtanh.pop %v735
    %v737 = vmul.f32 %v154, %v736
    %v738 = vadd.f32 %v737, %v155
    %v739 = vmul.f32 %v738, %v649
    %741 = vrot.lane.b32.xlu0 %v738, 64
    %v742 = vpop.permute.xlu0 %741
    %v744 = vmul.f32 %v738, %v742
    %746 = vrot.lane.b32.xlu0 %v744, 32
    %v747 = vpop.permute.xlu0 %746
    %v749 = vadd.f32 %v739, %v747
    %v750 = vtanh.pop %v749
    %752 = vrot.lane.b32.xlu0 %v750, 64
    %v753 = vpop.permute.xlu0 %752
    %v755 = vmul.f32 %v738, %v753
    %v756 = vadd.f32 %v656, %v755
    %s757 = scalar_lea.vmem [#allocation2], 6
    %v758 = vld [vmem:[%s757] ss:$8 sm:$0x3]
    %760 = vrot.lane.b32.xlu0 %v755, 32
    %v761 = vpop.permute.xlu0 %760
    %v762 = vsel %vm65, %v761, 0
    %764 = vmatprep.subr.mxu0 0.0
    %765 = vmatpush1.msra.mxu0 %v157
    %766 = vmatprep.subr.mxu0 0.0
    %767 = vmatpush1.msra.mxu0 %v158
    %768 = vmatprep.subr.mxu0 0.0
    %769 = vmatpush1.msra.mxu0 %v159
    %770 = vmatprep.subr.mxu0 0.0
    %771 = vmatpush1.msra.mxu0 %v160
    %772 = vmatprep.subr.mxu0 0.0
    %773 = vmatpush1.msra.mxu0 0.0
    %774 = vmatprep.subr.mxu0 0.0
    %775 = vmatpush1.msra.mxu0 0.0
    %776 = vmatprep.subr.mxu0 0.0
    %777 = vmatpush1.msra.mxu0 0.0
    %778 = vmatprep.subr.mxu0 0.0
    %779 = vmatpush1.msra.mxu0 0.0
    %780 = vmatprep.subr.mxu0 0.0
    %781 = vmatpush1.msra.mxu0 0.0
    %782 = vmatprep.subr.mxu0 0.0
    %783 = vmatpush1.msra.mxu0 0.0
    %784 = vmatprep.subr.mxu0 0.0
    %785 = vmatpush1.msra.mxu0 0.0
    %786 = vmatprep.subr.mxu0 0.0
    %787 = vmatpush1.msra.mxu0 0.0
    %788 = vmatprep.subr.mxu0 0.0
    %789 = vmatpush1.msra.mxu0 0.0
    %790 = vmatprep.subr.mxu0 0.0
    %791 = vmatpush1.msra.mxu0 0.0
    %792 = vmatprep.subr.mxu0 0.0
    %793 = vmatpush1.msra.mxu0 0.0
    %794 = vmatprep.subr.mxu0 0.0
    %795 = vmatpush1.msra.mxu0 0.0
    %796 = vmatprep.subr.mxu0 0.0
    %797 = vmatpush1.msra.mxu0 0.0
    %798 = vmatprep.subr.mxu0 0.0
    %799 = vmatpush1.msra.mxu0 0.0
    %800 = vmatprep.subr.mxu0 0.0
    %801 = vmatpush1.msra.mxu0 0.0
    %802 = vmatprep.subr.mxu0 0.0
    %803 = vmatpush1.msra.mxu0 0.0
    %804 = vmatprep.subr.mxu0 0.0
    %805 = vmatpush1.msra.mxu0 0.0
    %806 = vmatprep.subr.mxu0 0.0
    %807 = vmatpush1.msra.mxu0 0.0
    %808 = vmatprep.subr.mxu0 0.0
    %809 = vmatpush1.msra.mxu0 0.0
    %810 = vmatprep.subr.mxu0 0.0
    %811 = vmatpush1.msra.mxu0 0.0
    %812 = vmatprep.subr.mxu0 0.0
    %813 = vmatpush1.msra.mxu0 0.0
    %814 = vmatprep.subr.mxu0 0.0
    %815 = vmatpush1.msra.mxu0 0.0
    %816 = vmatprep.subr.mxu0 0.0
    %817 = vmatpush1.msra.mxu0 0.0
    %818 = vmatprep.subr.mxu0 0.0
    %819 = vmatpush1.msra.mxu0 0.0
    %820 = vmatprep.subr.mxu0 0.0
    %821 = vmatpush1.msra.mxu0 0.0
    %822 = vmatprep.subr.mxu0 0.0
    %823 = vmatpush1.msra.mxu0 0.0
    %824 = vmatprep.subr.mxu0 0.0
    %825 = vmatpush1.msra.mxu0 0.0
    %826 = vmatprep.subr.mxu0 0.0
    %827 = vmatpush1.msra.mxu0 0.0
    %828 = vmatprep.mubr.f32.mxu0 0.0
    %829 = vmatmul.mubr.f32.gmra.mrb[0].mxu0 %v762
    %v830 = vpop.f32.mrb[0].mxu0
    %v831 = vadd.f32 0.0, %v830
    %v832 = vpop.f32.mrb[0].mxu0
    %833 = vdwg.mxu0
    %v834 = vadd.f32 %v758, %v831
    %v835 = vmul.f32 %v154, %v834
    %v836 = vtanh.pop %v835
    %v837 = vmul.f32 %v154, %v836
    %v838 = vadd.f32 %v837, %v155
    %v839 = vmul.f32 %v838, %v749
    %841 = vrot.lane.b32.xlu0 %v838, 64
    %v842 = vpop.permute.xlu0 %841
    %v844 = vmul.f32 %v838, %v842
    %846 = vrot.lane.b32.xlu0 %v844, 32
    %v847 = vpop.permute.xlu0 %846
    %v849 = vadd.f32 %v839, %v847
    %v850 = vtanh.pop %v849
    %852 = vrot.lane.b32.xlu0 %v850, 64
    %v853 = vpop.permute.xlu0 %852
    %v855 = vmul.f32 %v838, %v853
    %v856 = vadd.f32 %v756, %v855
    %s857 = scalar_lea.vmem [#allocation2], 7
    %v858 = vld [vmem:[%s857] ss:$8 sm:$0x3]
    %860 = vrot.lane.b32.xlu0 %v855, 32
    %v861 = vpop.permute.xlu0 %860
    %v862 = vsel %vm65, %v861, 0
    %864 = vmatprep.subr.mxu0 0.0
    %865 = vmatpush1.msra.mxu0 %v157
    %866 = vmatprep.subr.mxu0 0.0
    %867 = vmatpush1.msra.mxu0 %v158
    %868 = vmatprep.subr.mxu0 0.0
    %869 = vmatpush1.msra.mxu0 %v159
    %870 = vmatprep.subr.mxu0 0.0
    %871 = vmatpush1.msra.mxu0 %v160
    %872 = vmatprep.subr.mxu0 0.0
    %873 = vmatpush1.msra.mxu0 0.0
    %874 = vmatprep.subr.mxu0 0.0
    %875 = vmatpush1.msra.mxu0 0.0
    %876 = vmatprep.subr.mxu0 0.0
    %877 = vmatpush1.msra.mxu0 0.0
    %878 = vmatprep.subr.mxu0 0.0
    %879 = vmatpush1.msra.mxu0 0.0
    %880 = vmatprep.subr.mxu0 0.0
    %881 = vmatpush1.msra.mxu0 0.0
    %882 = vmatprep.subr.mxu0 0.0
    %883 = vmatpush1.msra.mxu0 0.0
    %884 = vmatprep.subr.mxu0 0.0
    %885 = vmatpush1.msra.mxu0 0.0
    %886 = vmatprep.subr.mxu0 0.0
    %887 = vmatpush1.msra.mxu0 0.0
    %888 = vmatprep.subr.mxu0 0.0
    %889 = vmatpush1.msra.mxu0 0.0
    %890 = vmatprep.subr.mxu0 0.0
    %891 = vmatpush1.msra.mxu0 0.0
    %892 = vmatprep.subr.mxu0 0.0
    %893 = vmatpush1.msra.mxu0 0.0
    %894 = vmatprep.subr.mxu0 0.0
    %895 = vmatpush1.msra.mxu0 0.0
    %896 = vmatprep.subr.mxu0 0.0
    %897 = vmatpush1.msra.mxu0 0.0
    %898 = vmatprep.subr.mxu0 0.0
    %899 = vmatpush1.msra.mxu0 0.0
    %900 = vmatprep.subr.mxu0 0.0
    %901 = vmatpush1.msra.mxu0 0.0
    %902 = vmatprep.subr.mxu0 0.0
    %903 = vmatpush1.msra.mxu0 0.0
    %904 = vmatprep.subr.mxu0 0.0
    %905 = vmatpush1.msra.mxu0 0.0
    %906 = vmatprep.subr.mxu0 0.0
    %907 = vmatpush1.msra.mxu0 0.0
    %908 = vmatprep.subr.mxu0 0.0
    %909 = vmatpush1.msra.mxu0 0.0
    %910 = vmatprep.subr.mxu0 0.0
    %911 = vmatpush1.msra.mxu0 0.0
    %912 = vmatprep.subr.mxu0 0.0
    %913 = vmatpush1.msra.mxu0 0.0
    %914 = vmatprep.subr.mxu0 0.0
    %915 = vmatpush1.msra.mxu0 0.0
    %916 = vmatprep.subr.mxu0 0.0
    %917 = vmatpush1.msra.mxu0 0.0
    %918 = vmatprep.subr.mxu0 0.0
    %919 = vmatpush1.msra.mxu0 0.0
    %920 = vmatprep.subr.mxu0 0.0
    %921 = vmatpush1.msra.mxu0 0.0
    %922 = vmatprep.subr.mxu0 0.0
    %923 = vmatpush1.msra.mxu0 0.0
    %924 = vmatprep.subr.mxu0 0.0
    %925 = vmatpush1.msra.mxu0 0.0
    %926 = vmatprep.subr.mxu0 0.0
    %927 = vmatpush1.msra.mxu0 0.0
    %928 = vmatprep.mubr.f32.mxu0 0.0
    %929 = vmatmul.mubr.f32.gmra.mrb[0].mxu0 %v862
    %v930 = vpop.f32.mrb[0].mxu0
    %v931 = vadd.f32 0.0, %v930
    %v932 = vpop.f32.mrb[0].mxu0
    %933 = vdwg.mxu0
    %v934 = vadd.f32 %v858, %v931
    %v935 = vmul.f32 %v154, %v934
    %v936 = vtanh.pop %v935
    %v937 = vmul.f32 %v154, %v936
    %v938 = vadd.f32 %v937, %v155
    %v939 = vmul.f32 %v938, %v849
    %941 = vrot.lane.b32.xlu0 %v938, 64
    %v942 = vpop.permute.xlu0 %941
    %v944 = vmul.f32 %v938, %v942
    %946 = vrot.lane.b32.xlu0 %v944, 32
    %v947 = vpop.permute.xlu0 %946
    %v949 = vadd.f32 %v939, %v947
    %v950 = vtanh.pop %v949
    %952 = vrot.lane.b32.xlu0 %v950, 64
    %v953 = vpop.permute.xlu0 %952
    %v955 = vmul.f32 %v938, %v953
    %v956 = vadd.f32 %v856, %v955
    %v957 = vmul.f32 %v956, 0.125
    %v958 = vld [vmem:[%s4] sm:$0xff]
    %v959 = vld [vmem:[%s4 + $0x8] sm:$0xff]
    %v960 = vld [vmem:[%s4 + $0x10] sm:$0xff]
    %v961 = vld [vmem:[%s4 + $0x18] sm:$0xff]
    %v962 = vld [vmem:[%s5] sm:$0x1]
    %v964 = vlaneseq
    %v965 = vshrl.u32 %v964, 7
    %v966 = vsub.s32 0, %v965
    %v967 = vrot.slane %v962, %v966
    %970 = vrot.lane.b32.xlu0 %v957, 32
    %v971 = vpop.permute.xlu0 %970
    %v972 = vsel %vm65, %v971, 0
    %974 = vmatprep.subr.mxu0 0.0
    %975 = vmatpush1.msra.mxu0 %v958
    %976 = vmatprep.subr.mxu0 0.0
    %977 = vmatpush1.msra.mxu0 %v959
    %978 = vmatprep.subr.mxu0 0.0
    %979 = vmatpush1.msra.mxu0 %v960
    %980 = vmatprep.subr.mxu0 0.0
    %981 = vmatpush1.msra.mxu0 %v961
    %982 = vmatprep.subr.mxu0 0.0
    %983 = vmatpush1.msra.mxu0 0.0
    %984 = vmatprep.subr.mxu0 0.0
    %985 = vmatpush1.msra.mxu0 0.0
    %986 = vmatprep.subr.mxu0 0.0
    %987 = vmatpush1.msra.mxu0 0.0
    %988 = vmatprep.subr.mxu0 0.0
    %989 = vmatpush1.msra.mxu0 0.0
    %990 = vmatprep.subr.mxu0 0.0
    %991 = vmatpush1.msra.mxu0 0.0
    %992 = vmatprep.subr.mxu0 0.0
    %993 = vmatpush1.msra.mxu0 0.0
    %994 = vmatprep.subr.mxu0 0.0
    %995 = vmatpush1.msra.mxu0 0.0
    %996 = vmatprep.subr.mxu0 0.0
    %997 = vmatpush1.msra.mxu0 0.0
    %998 = vmatprep.subr.mxu0 0.0
    %999 = vmatpush1.msra.mxu0 0.0
    %1000 = vmatprep.subr.mxu0 0.0
    %1001 = vmatpush1.msra.mxu0 0.0
    %1002 = vmatprep.subr.mxu0 0.0
    %1003 = vmatpush1.msra.mxu0 0.0
    %1004 = vmatprep.subr.mxu0 0.0
    %1005 = vmatpush1.msra.mxu0 0.0
    %1006 = vmatprep.subr.mxu0 0.0
    %1007 = vmatpush1.msra.mxu0 0.0
    %1008 = vmatprep.subr.mxu0 0.0
    %1009 = vmatpush1.msra.mxu0 0.0
    %1010 = vmatprep.subr.mxu0 0.0
    %1011 = vmatpush1.msra.mxu0 0.0
    %1012 = vmatprep.subr.mxu0 0.0
    %1013 = vmatpush1.msra.mxu0 0.0
    %1014 = vmatprep.subr.mxu0 0.0
    %1015 = vmatpush1.msra.mxu0 0.0
    %1016 = vmatprep.subr.mxu0 0.0
    %1017 = vmatpush1.msra.mxu0 0.0
    %1018 = vmatprep.subr.mxu0 0.0
    %1019 = vmatpush1.msra.mxu0 0.0
    %1020 = vmatprep.subr.mxu0 0.0
    %1021 = vmatpush1.msra.mxu0 0.0
    %1022 = vmatprep.subr.mxu0 0.0
    %1023 = vmatpush1.msra.mxu0 0.0
    %1024 = vmatprep.subr.mxu0 0.0
    %1025 = vmatpush1.msra.mxu0 0.0
    %1026 = vmatprep.subr.mxu0 0.0
    %1027 = vmatpush1.msra.mxu0 0.0
    %1028 = vmatprep.subr.mxu0 0.0
    %1029 = vmatpush1.msra.mxu0 0.0
    %1030 = vmatprep.subr.mxu0 0.0
    %1031 = vmatpush1.msra.mxu0 0.0
    %1032 = vmatprep.subr.mxu0 0.0
    %1033 = vmatpush1.msra.mxu0 0.0
    %1034 = vmatprep.subr.mxu0 0.0
    %1035 = vmatpush1.msra.mxu0 0.0
    %1036 = vmatprep.subr.mxu0 0.0
    %1037 = vmatpush1.msra.mxu0 0.0
    %1038 = vmatprep.mubr.f32.mxu0 0.0
    %1039 = vmatmul.mubr.f32.gmra.mrb[0].mxu0 %v972
    %v1040 = vpop.f32.mrb[0].mxu0
    %v1041 = vadd.f32 %v967, %v1040
    %v1042 = vpop.f32.mrb[0].mxu0
    %1043 = vdwg.mxu0
    %vm1044 = vcmask 9216
    %1045 = vst.msk [vmem:[#allocation8] sm:$0x3] %vm1044, %v1041
    // Predicated region
    $region34: #{tpu_custom_call.1} parent=1 // pred_check
      _
    $region35: #{tpu_custom_call.1} parent=1 // pred_check_branch
      %1047 = sbr.rel (0) target = $region37
    $region36: #{tpu_custom_call.1} parent=1 // pred_region
      %s1049 = ssub.s32 32, 32
      %1050 = vsyncadd [#allocation5], %s1049
      %s1052 = sshll.u32 [#allocation8], 4
      %s1053 = int_to_ptr.vmem [resolvable:$true] %s1052
      %1055 = dma.vmem_to_hbm [thread:$0]  %s1053, 32, %s6, [#allocation5]
    $region37: #{tpu_custom_call.1} parent=1 // pred_fallthru
      _
    // Predicated region
    $region38: #{tpu_custom_call.1} parent=1 // pred_check
      _
    $region39: #{tpu_custom_call.1} parent=1 // pred_check_branch
      %1057 = sbr.rel (0) target = $region41
    $region40: #{tpu_custom_call.1} parent=1 // pred_region
      %1058 = dma.done [#allocation5], 32
    $region41: #{tpu_custom_call.1} parent=1 // pred_fallthru
      _
    %1059 = vsyncpa [#allocation4], 1
    %1060 = vsyncpa [#allocation7], 1
    %1061 = vsyncpa [#allocation5], 1

</llo_original>
